<compile_context>
chip_gen: v7x
topology: tpu7x:2x2x1
jax: 0.10.0
libtpu: 0.0.40
codegen_flags: <defaults>
</compile_context>

<pallas_src>
import functools

import jax
import jax.numpy as jnp
from jax import lax
from jax.experimental import pallas as pl
from jax.experimental.pallas import tpu as pltpu


def _mean_pool_kernel(hidden_ref, mask_ref, count_ref, out_ref, *, s_rem, use_mxu):
    # hidden_ref: (bt, st, ht)  native dtype (f32 / bf16 ...)
    # mask_ref:   (bt, 1,  st)  native dtype, values are exactly 0/1
    # count_ref:  (bt, 1,  1)   float32 precomputed valid-token counts
    # out_ref:    (bt, 1,  ht)  float32, VMEM-resident across the S axis
    s_step = pl.program_id(2)
    n_s = pl.num_programs(2)

    h = hidden_ref[...]
    m = mask_ref[...]

    if s_rem:  # static: S not divisible by st -> zero the garbage tail rows
        st = hidden_ref.shape[1]
        s_idx = lax.broadcasted_iota(jnp.int32, h.shape, 1)
        limit = jnp.where(s_step == n_s - 1, s_rem, st)
        h = jnp.where(s_idx < limit, h, jnp.zeros_like(h))

    if use_mxu:
        # (bt,1,st) @ (bt,st,ht) -> (bt,1,ht), f32 accumulation on the MXU.
        part = jnp.einsum("bqs,bsh->bqh", m, h,
                          preferred_element_type=jnp.float32)
    else:
        # VPU formulation: relayout mask to (bt, st, 1) and reduce sublanes.
        mt = jnp.swapaxes(m, 1, 2)                       # (bt, st, 1)
        part = jnp.sum((h * mt).astype(jnp.float32), axis=1, keepdims=True)

    @pl.when(s_step == 0)
    def _init():
        out_ref[...] = part

    @pl.when(s_step > 0)
    def _accum():
        out_ref[...] += part

    @pl.when(s_step == n_s - 1)
    def _finalize():
        denom = jnp.maximum(count_ref[...], 1e-9)        # clamp(min=1e-9)
        inv = pl.reciprocal(denom, approx=True)          # EUP reciprocal
        inv = inv * (2.0 - denom * inv)                  # Newton step -> f32 exact
        out_ref[...] = out_ref[...] * inv


def _round_up(x, m):
    return (x + m - 1) // m * m


def _tpu_vmem_bytes():
    try:
        return int(pltpu.get_tpu_info().vmem_capacity_bytes)
    except Exception:
        return None


def _pick_tiles(B, S, H, itemsize, budget, split_for_megacore,
                batch_tile=None, seq_tile=None):
    mask_sub = max(8, 32 // itemsize)  # sublane tile of the mask/hidden dtype

    def fits(bt, st, ht):
        hidden_b = 2 * bt * _round_up(st, mask_sub) * _round_up(ht, 128) * itemsize
        mask_b = 2 * bt * mask_sub * _round_up(st, 128) * itemsize
        out_b = 2 * bt * 8 * _round_up(ht, 128) * 4
        cnt_b = 2 * bt * 8 * 128 * 4
        return hidden_b + mask_b + out_b + cnt_b + (4 << 20) <= budget

    bt0 = min(B, batch_tile) if batch_tile is not None else min(B, 8)
    if seq_tile is not None:
        st_cands = [min(S, seq_tile)]
    elif S <= 512:
        st_cands = [S]
    else:
        st_cands = [c for c in (2048, 1024, 512, 256) if c <= S] or [256]
    if H > 1024 and H % 128 == 0:
        ht_cands = [H] + [c for c in (8192, 4096, 2048, 1024, 512)
                          if c < H and H % c == 0]
    else:
        ht_cands = [H]

    bt_cands = [bt0] + [b for b in (4, 2, 1) if b < bt0]
    choice = None
    for bt in bt_cands:                # prefer full bt; tile H before shrinking st<256
        for ht in ht_cands:
            for st in st_cands:
                if fits(bt, st, ht):
                    choice = (bt, st, ht)
                    break
            if choice is not None:
                break
        if choice is not None:
            break
    if choice is None:                 # pathological: take the smallest tiles
        choice = (1, st_cands[-1], ht_cands[-1])
    bt, st, ht = choice

    # 2-TensorCore chips (v7x): keep >= 2 iterations on the "parallel" axes so
    # both cores get work.  No-op on 1-TC chips; skipped if bt was pinned.
    if split_for_megacore and batch_tile is None:
        if pl.cdiv(B, bt) * (H // ht) < 2:
            if B >= 2:
                bt = pl.cdiv(B, 2)
            elif ht == H and H % 256 == 0:
                ht = H // 2
    return bt, st, ht


@functools.partial(jax.jit, static_argnames=("use_mxu", "batch_tile", "seq_tile"))
def mean_pooling(last_hidden_state, attention_mask, *, use_mxu=None,
                 batch_tile=None, seq_tile=None):
    """last_hidden_state: (B, S, H) float; attention_mask: (B, S) 0/1 mask.
    Returns (B, H) float32 (matches PyTorch float promotion)."""
    B, S, H = last_hidden_state.shape
    dtype = last_hidden_state.dtype
    itemsize = jnp.dtype(dtype).itemsize

    vmem_cap = _tpu_vmem_bytes()
    if vmem_cap is None:
        vmem_cap = 64 << 20          # size tiles conservatively (fits any chip)
        default_mxu = True           # but keep the well-proven MXU formulation
    else:
        default_mxu = vmem_cap > (64 << 20)   # v5e/v6e (128 MiB) -> MXU, v7x -> VPU
    small_vmem = vmem_cap <= (64 << 20)
    if vmem_cap >= (128 << 20):
        budget = 96 << 20
    else:
        budget = max(vmem_cap - (20 << 20), vmem_cap // 2)
    if use_mxu is None:
        use_mxu = default_mxu

    bt, st, ht = _pick_tiles(B, S, H, itemsize, budget, small_vmem,
                             batch_tile, seq_tile)
    grid_b = pl.cdiv(B, bt)
    grid_h = H // ht
    grid_s = pl.cdiv(S, st)
    s_rem = S % st if grid_s * st != S else 0

    # Token counts, precomputed once on the tiny mask (removes the per-step
    # cross-lane reduce from the kernel).  NOTE: casting the 0/1 mask to the
    # hidden dtype below is exact only for hard 0/1 masks.
    counts = attention_mask.astype(jnp.float32).sum(axis=-1).reshape(B, 1, 1)
    mask = attention_mask.astype(dtype).reshape(B, 1, S)   # lane-dense layout
    if s_rem:
        mask = jnp.pad(mask, ((0, 0), (0, 0), (0, grid_s * st - S)))

    kernel = functools.partial(_mean_pool_kernel, s_rem=s_rem,
                               use_mxu=bool(use_mxu))

    cost = pl.CostEstimate(
        flops=2 * B * S * H,
        transcendentals=B,
        bytes_accessed=B * S * H * itemsize + B * S * itemsize + B * H * 4 + B * 4,
    )

    out = pl.pallas_call(
        kernel,
        out_shape=jax.ShapeDtypeStruct((B, 1, H), jnp.float32),
        grid_spec=pltpu.PrefetchScalarGridSpec(
            num_scalar_prefetch=0,
            grid=(grid_b, grid_h, grid_s),
            in_specs=[
                pl.BlockSpec((bt, st, ht), lambda b, f, s: (b, s, f)),
                pl.BlockSpec((bt, 1, st), lambda b, f, s: (b, 0, s)),
                pl.BlockSpec((bt, 1, 1), lambda b, f, s: (b, 0, 0)),
            ],
            out_specs=pl.BlockSpec((bt, 1, ht), lambda b, f, s: (b, 0, f)),
        ),
        compiler_params=pltpu.CompilerParams(
            dimension_semantics=("parallel", "parallel", "arbitrary"),
            vmem_limit_bytes=int(budget)),
        cost_estimate=cost,
    )(last_hidden_state, mask, counts)

    return out[:, 0, :]


def _reference(last_hidden_state, attention_mask):
    m = attention_mask.astype(jnp.float32)[..., None]          # (B, S, 1)
    m = jnp.broadcast_to(m, last_hidden_state.shape)
    mask_sum = jnp.clip(m.sum(axis=1), 1e-09, None)
    masked = (last_hidden_state.astype(jnp.float32) * m).sum(axis=1)
    return masked / mask_sum


if __name__ == "__main__":
    key = jax.random.PRNGKey(0)
    k1, k2 = jax.random.split(key)

    # Small shape consistent with the module: batch=2, seq=8, hidden=32.
    B, S, H = 2, 8, 32
    hidden = jax.random.normal(k1, (B, S, H), dtype=jnp.float32)
    attn = jnp.stack([
        jnp.concatenate([jnp.ones((5,), jnp.int32), jnp.zeros((3,), jnp.int32)]),
        jnp.ones((S,), jnp.int32),
    ], axis=0)
    ref = _reference(hidden, attn)

    # Auto (chip-gated) formulation.
    out = jax.block_until_ready(mean_pooling(hidden, attn))
    assert out.shape == (B, H)
    assert jnp.allclose(out, ref, atol=1e-5, rtol=1e-5), "auto path mismatch"

    # Force both formulations (MXU einsum and VPU multiply+reduce).
    for mxu in (True, False):
        o = jax.block_until_ready(mean_pooling(hidden, attn, use_mxu=mxu))
        assert jnp.allclose(o, ref, atol=1e-5, rtol=1e-5), f"use_mxu={mxu} mismatch"

    # Ragged batch tile + ragged sequence tail (no padding of the big tensor).
    B2, S2, H2 = 3, 700, 64
    hidden2 = jax.random.normal(k2, (B2, S2, H2), dtype=jnp.float32)
    lens = jnp.array([700, 123, 1], dtype=jnp.int32)
    attn2 = (jnp.arange(S2)[None, :] < lens[:, None]).astype(jnp.int32)
    ref2 = _reference(hidden2, attn2)
    for mxu in (True, False):
        o2 = jax.block_until_ready(
            mean_pooling(hidden2, attn2, use_mxu=mxu, batch_tile=2, seq_tile=512))
        assert o2.shape == (B2, H2)
        assert jnp.allclose(o2, ref2, atol=1e-5, rtol=1e-5), "ragged-tail mismatch"

    print("KERNEL_OK")
</pallas_src>

<mosaic_0001>
module attributes {stable_mosaic.version = 11 : i64} {
  func.func @_mean_pool_kernel(%arg0: i32, %arg1: i32, %arg2: i32, %arg3: memref<1x8x32xf32, #tpu.memory_space<vmem>>, %arg4: memref<1x1x8xf32, #tpu.memory_space<vmem>>, %arg5: memref<1x1x1xf32, #tpu.memory_space<vmem>>, %arg6: memref<1x1x32xf32, #tpu.memory_space<vmem>>) attributes {dimension_semantics = [#tpu.dimension_semantics<parallel>, #tpu.dimension_semantics<parallel>, #tpu.dimension_semantics<arbitrary>], iteration_bounds = array<i64: 2, 1, 1>, scalar_prefetch = 0 : i64, scratch_operands = 0 : i64, tpu.core_type = #tpu.core_type<tc>, window_params = [{transform_indices = @transform_0, window_bounds = array<i64: 1, 8, 32>}, {transform_indices = @transform_1, window_bounds = array<i64: 1, 1, 8>}, {transform_indices = @transform_2, window_bounds = array<i64: 1, 1, 1>}, {transform_indices = @transform_3, window_bounds = array<i64: 1, 1, 32>}]} {
    %c0 = arith.constant 0 : index
    %c0_0 = arith.constant 0 : index
    %c0_1 = arith.constant 0 : index
    %0 = vector.load %arg3[%c0, %c0_0, %c0_1] : memref<1x8x32xf32, #tpu.memory_space<vmem>>, vector<1x8x32xf32>
    %c0_2 = arith.constant 0 : index
    %c0_3 = arith.constant 0 : index
    %c0_4 = arith.constant 0 : index
    %1 = vector.load %arg4[%c0_2, %c0_3, %c0_4] : memref<1x1x8xf32, #tpu.memory_space<vmem>>, vector<1x1x8xf32>
    "tpu.trace_start"() <{level = 10 : i32, message = "bqs,bsh->bqh"}> : () -> ()
    %cst = arith.constant dense<0.000000e+00> : vector<1x1x32xf32>
    %2 = tpu.matmul %1, %0, %cst {dimension_numbers = #tpu.dot_dimension_numbers<[2], [1], [1], [2], [0, 0, 0, 1, 1, 2], [0], [0]>} : vector<1x1x8xf32>, vector<1x8x32xf32>, vector<1x1x32xf32> -> vector<1x1x32xf32>
    %c0_i32 = arith.constant 0 : i32
    "tpu.trace_stop"() : () -> ()
    %3 = arith.cmpi eq, %arg2, %c0_i32 : i32
    %4 = arith.extui %3 : i1 to i32
    %c0_i32_5 = arith.constant 0 : i32
    %5 = arith.cmpi ne, %4, %c0_i32_5 : i32
    scf.if %5 {
      %c0_10 = arith.constant 0 : index
      %c0_11 = arith.constant 0 : index
      %c0_12 = arith.constant 0 : index
      %12 = vector.load %arg6[%c0_10, %c0_11, %c0_12] : memref<1x1x32xf32, #tpu.memory_space<vmem>>, vector<1x1x32xf32>
      tpu.vector_store %arg6[%c0_10, %c0_11, %c0_12], %2 {strides = array<i32>} : memref<1x1x32xf32, #tpu.memory_space<vmem>>, vector<1x1x32xf32>,
    } else {
    }
    %c0_i32_6 = arith.constant 0 : i32
    %6 = arith.cmpi sgt, %arg2, %c0_i32_6 : i32
    %7 = arith.extui %6 : i1 to i32
    %c0_i32_7 = arith.constant 0 : i32
    %8 = arith.cmpi ne, %7, %c0_i32_7 : i32
    scf.if %8 {
      %c0_10 = arith.constant 0 : index
      %c0_11 = arith.constant 0 : index
      %c0_12 = arith.constant 0 : index
      %12 = vector.load %arg6[%c0_10, %c0_11, %c0_12] : memref<1x1x32xf32, #tpu.memory_space<vmem>>, vector<1x1x32xf32>
      %13 = arith.addf %12, %2 : vector<1x1x32xf32>
      %c0_13 = arith.constant 0 : index
      %c0_14 = arith.constant 0 : index
      %c0_15 = arith.constant 0 : index
      %14 = vector.load %arg6[%c0_13, %c0_14, %c0_15] : memref<1x1x32xf32, #tpu.memory_space<vmem>>, vector<1x1x32xf32>
      tpu.vector_store %arg6[%c0_13, %c0_14, %c0_15], %13 {strides = array<i32>} : memref<1x1x32xf32, #tpu.memory_space<vmem>>, vector<1x1x32xf32>,
    } else {
    }
    %c0_i32_8 = arith.constant 0 : i32
    %9 = arith.cmpi eq, %arg2, %c0_i32_8 : i32
    %10 = arith.extui %9 : i1 to i32
    %c0_i32_9 = arith.constant 0 : i32
    %11 = arith.cmpi ne, %10, %c0_i32_9 : i32
    scf.if %11 {
      %c0_10 = arith.constant 0 : index
      %c0_11 = arith.constant 0 : index
      %c0_12 = arith.constant 0 : index
      %12 = vector.load %arg5[%c0_10, %c0_11, %c0_12] : memref<1x1x1xf32, #tpu.memory_space<vmem>>, vector<1x1x1xf32>
      %cst_13 = arith.constant 9.99999971E-10 : f32
      %13 = vector.broadcast %cst_13 : f32 to vector<1x1x1xf32>
      %14 = arith.maximumf %12, %13 : vector<1x1x1xf32>
      %15 = tpu.reciprocal %14 {approx = true} : vector<1x1x1xf32> -> vector<1x1x1xf32>
      %16 = arith.mulf %14, %15 : vector<1x1x1xf32>
      %cst_14 = arith.constant 2.000000e+00 : f32
      %17 = vector.broadcast %cst_14 : f32 to vector<1x1x1xf32>
      %18 = arith.subf %17, %16 : vector<1x1x1xf32>
      %19 = arith.mulf %15, %18 : vector<1x1x1xf32>
      %c0_15 = arith.constant 0 : index
      %c0_16 = arith.constant 0 : index
      %c0_17 = arith.constant 0 : index
      %20 = vector.load %arg6[%c0_15, %c0_16, %c0_17] : memref<1x1x32xf32, #tpu.memory_space<vmem>>, vector<1x1x32xf32>
      %21 = vector.broadcast %19 : vector<1x1x1xf32> to vector<1x1x32xf32>
      %22 = arith.mulf %20, %21 : vector<1x1x32xf32>
      %c0_18 = arith.constant 0 : index
      %c0_19 = arith.constant 0 : index
      %c0_20 = arith.constant 0 : index
      %23 = vector.load %arg6[%c0_18, %c0_19, %c0_20] : memref<1x1x32xf32, #tpu.memory_space<vmem>>, vector<1x1x32xf32>
      tpu.vector_store %arg6[%c0_18, %c0_19, %c0_20], %22 {strides = array<i32>} : memref<1x1x32xf32, #tpu.memory_space<vmem>>, vector<1x1x32xf32>,
    } else {
    }
    return
  }
  func.func @transform_0(%arg0: i32, %arg1: i32, %arg2: i32) -> (i32, i32, i32) {
    %c0_i32 = arith.constant 0 : i32
    return %arg0, %arg2, %arg1 : i32, i32, i32
  }
  func.func @transform_1(%arg0: i32, %arg1: i32, %arg2: i32) -> (i32, i32, i32) {
    %c0_i32 = arith.constant 0 : i32
    %c0_i32_0 = arith.constant 0 : i32
    return %arg0, %c0_i32, %arg2 : i32, i32, i32
  }
  func.func @transform_2(%arg0: i32, %arg1: i32, %arg2: i32) -> (i32, i32, i32) {
    %c0_i32 = arith.constant 0 : i32
    %c0_i32_0 = arith.constant 0 : i32
    %c0_i32_1 = arith.constant 0 : i32
    return %arg0, %c0_i32, %c0_i32_0 : i32, i32, i32
  }
  func.func @transform_3(%arg0: i32, %arg1: i32, %arg2: i32) -> (i32, i32, i32) {
    %c0_i32 = arith.constant 0 : i32
    %c0_i32_0 = arith.constant 0 : i32
    return %arg0, %c0_i32, %arg1 : i32, i32, i32
  }
}

</mosaic_0001>

<llo_original>
// kernel: mean_pooling.1
$region0: #{mean_pooling.1}
  #allocation0 [shape = 'u32[]', space=smem, size = 0x4, offset = 0x4, fixed_abs, tag = 'smem constant byte address 0x4 - core index']
  #allocation1 [shape = 'u32[144,128]{1,0:T(1,128)}', space=vmem, size = 0x12000, scoped, tag = 'internal scratch']
  %s0 = inlined_call_operand.vmem [shape: f32[2,8,32], index: 0, kind: input, shape index: {}]
  %s1 = inlined_call_operand.vmem [shape: f32[2,1,8], index: 1, kind: input, shape index: {}]
  %s2 = inlined_call_operand.vmem [shape: f32[2,1,1], index: 2, kind: input, shape index: {}]
  %s3 = inlined_call_operand.hbm [shape: f32[2,1,32], index: 3, kind: output, shape index: {}]
  %s4 = sld [smem:[#allocation0]]
  $region57: #{mean_pooling.1} parent=0
    _
  %s6 = ssub.s32 1, %s4
  %s7 = scalar_select 0, %s6, %s4
  $region1: #{mean_pooling.1} parent=0
    #allocation2 [shape = 'u8[1024]{0}', space=vmem, size = 0x400, scoped, tag = 'output window, operand 0']
    #allocation3 [shape = 's32[2]{0}', space=sflag, size = 0x8, scoped, tag = 'scoped memory for mean_pooling.1']
    %8 = vsyncpa [#allocation3], 0
    %s9 = scalar_lea.sflag [#allocation3], 1
    %10 = vsyncpa %s9, 0
    loop: start=0, step=1, limit=4
    $region2: #{mean_pooling.1} parent=1 // loop_pre_header
      _
    $region3: #{mean_pooling.1} parent=1 // loop_header
      %s12 = sphi 0, %s16
      %p13 = scmp.ge.s32.totalorder %s12, 4
      %s19 = sphi 0, %s38
      %s20 = sphi 0, %s34
      %s21 = sphi 0, %s30
      %s22 = sphi 0, %s19
      %s23 = sphi 0, %s20
      %s24 = sphi 0, %s21
      %s25 = sphi 0, %s22
      %s26 = sphi 0, %s23
      %s27 = sphi 0, %s24
      %s45 = sphi 0, %s47
      %s48 = sphi 0, %s45
      %s49 = sphi 0, %s48
      %s65 = sphi 0, %s49
      %s73 = sphi 0, %s75
      %s76 = sphi 0, %s73
      %s77 = sphi 0, %s76
      %s93 = sphi 0, %s77
      %s99 = sphi 0, %s101
      %s102 = sphi 0, %s99
      %s103 = sphi 0, %s102
      %s119 = sphi 0, %s103
      %s127 = sphi 0, %s129
      %s130 = sphi 0, %s127
      %s131 = sphi 0, %s130
      %s147 = sphi 0, %s131
    $region4: #{mean_pooling.1} parent=1 // loop_header_branch
      %15 = sbr.rel (%p13) target = $region8
    $region5: #{mean_pooling.1} parent=1 // loop_body
      %s17 = ssub.s32 %s12, 1
      %s18 = ssub.s32 %s12, 2
      %s28 = sadd.s32 1, %s21
      %p29 = scmp.ge.s32.totalorder %s28, 1
      %s30 = scalar_select %p29, 0, %s28
      %s31 = sadd.s32 1, %s20
      %s32 = scalar_select %p29, %s31, %s20
      %p33 = scmp.ge.s32.totalorder %s32, 1
      %s34 = scalar_select %p33, 0, %s32
      %s35 = sadd.s32 1, %s19
      %s36 = scalar_select %p33, %s35, %s19
      %p37 = scmp.ge.s32.totalorder %s36, 2
      %s38 = scalar_select %p37, 0, %s36
      %s39 = ssub.s32 %s19, %s38
      %s40 = ssub.s32 %s21, %s30
      %s41 = sor.u32 %s39, %s40
      %s42 = ssub.s32 %s20, %s34
      %s43 = sor.u32 %s41, %s42
      %p44 = scmp.eq.s32.totalorder %s43, 0
      %s46 = sadd.s32 %s45, 1
      %s47 = scalar_select %p44, %s45, %s46
      %p50 = pneg %p44
      %p51 = scmp.eq.s32.totalorder %s12, 1
      %p52 = por %p50, %p51
      %p53 = scmp.ne.s32.totalorder %s45, %s48
      %p54 = scmp.eq.s32.totalorder %s12, 0
      %p55 = por %p53, %p54
      %p56 = scmp.ne.s32.totalorder %s45, %s48
      %p57 = scmp.eq.s32.totalorder %s17, 1
      %p58 = por %p56, %p57
      %p59 = scmp.ne.s32.totalorder %s48, %s49
      %p60 = scmp.eq.s32.totalorder %s17, 0
      %p61 = por %p59, %p60
      %p62 = scmp.ne.s32.totalorder %s48, %s49
      %p63 = scmp.eq.s32.totalorder %s18, 1
      %p64 = por %p62, %p63
      %p66 = scmp.ne.s32.totalorder %s49, %s65
      %p67 = scmp.eq.s32.totalorder %s18, 0
      %p68 = por %p66, %p67
      %s69 = ssub.s32 %s19, %s38
      %s70 = ssub.s32 %s21, %s30
      %s71 = sor.u32 %s69, %s70
      %p72 = scmp.eq.s32.totalorder %s71, 0
      %s74 = sadd.s32 %s73, 1
      %s75 = scalar_select %p72, %s73, %s74
      %p78 = pneg %p72
      %p79 = scmp.eq.s32.totalorder %s12, 1
      %p80 = por %p78, %p79
      %p81 = scmp.ne.s32.totalorder %s73, %s76
      %p82 = scmp.eq.s32.totalorder %s12, 0
      %p83 = por %p81, %p82
      %p84 = scmp.ne.s32.totalorder %s73, %s76
      %p85 = scmp.eq.s32.totalorder %s17, 1
      %p86 = por %p84, %p85
      %p87 = scmp.ne.s32.totalorder %s76, %s77
      %p88 = scmp.eq.s32.totalorder %s17, 0
      %p89 = por %p87, %p88
      %p90 = scmp.ne.s32.totalorder %s76, %s77
      %p91 = scmp.eq.s32.totalorder %s18, 1
      %p92 = por %p90, %p91
      %p94 = scmp.ne.s32.totalorder %s77, %s93
      %p95 = scmp.eq.s32.totalorder %s18, 0
      %p96 = por %p94, %p95
      %s97 = ssub.s32 %s19, %s38
      %p98 = scmp.eq.s32.totalorder %s97, 0
      %s100 = sadd.s32 %s99, 1
      %s101 = scalar_select %p98, %s99, %s100
      %p104 = pneg %p98
      %p105 = scmp.eq.s32.totalorder %s12, 1
      %p106 = por %p104, %p105
      %p107 = scmp.ne.s32.totalorder %s99, %s102
      %p108 = scmp.eq.s32.totalorder %s12, 0
      %p109 = por %p107, %p108
      %p110 = scmp.ne.s32.totalorder %s99, %s102
      %p111 = scmp.eq.s32.totalorder %s17, 1
      %p112 = por %p110, %p111
      %p113 = scmp.ne.s32.totalorder %s102, %s103
      %p114 = scmp.eq.s32.totalorder %s17, 0
      %p115 = por %p113, %p114
      %p116 = scmp.ne.s32.totalorder %s102, %s103
      %p117 = scmp.eq.s32.totalorder %s18, 1
      %p118 = por %p116, %p117
      %p120 = scmp.ne.s32.totalorder %s103, %s119
      %p121 = scmp.eq.s32.totalorder %s18, 0
      %p122 = por %p120, %p121
      %s123 = ssub.s32 %s19, %s38
      %s124 = ssub.s32 %s20, %s34
      %s125 = sor.u32 %s123, %s124
      %p126 = scmp.eq.s32.totalorder %s125, 0
      %s128 = sadd.s32 %s127, 1
      %s129 = scalar_select %p126, %s127, %s128
      %p132 = pneg %p126
      %p133 = scmp.eq.s32.totalorder %s12, 1
      %p134 = por %p132, %p133
      %p135 = scmp.ne.s32.totalorder %s127, %s130
      %p136 = scmp.eq.s32.totalorder %s12, 0
      %p137 = por %p135, %p136
      %p138 = scmp.ne.s32.totalorder %s127, %s130
      %p139 = scmp.eq.s32.totalorder %s17, 1
      %p140 = por %p138, %p139
      %p141 = scmp.ne.s32.totalorder %s130, %s131
      %p142 = scmp.eq.s32.totalorder %s17, 0
      %p143 = por %p141, %p142
      %p144 = scmp.ne.s32.totalorder %s130, %s131
      %p145 = scmp.eq.s32.totalorder %s18, 1
      %p146 = por %p144, %p145
      %p148 = scmp.ne.s32.totalorder %s131, %s147
      %p149 = scmp.eq.s32.totalorder %s18, 0
      %p150 = por %p148, %p149
      %p151 = scmp.le.s32.totalorder 1, %s12
      %p152 = scmp.lt.s32.totalorder %s12, 3
      %p153 = pnand %p151, %p152
      %p154 = pneg %p153
      // Predicated region
      $region9: #{mean_pooling.1} parent=5 // pred_check
        _
      $region10: #{mean_pooling.1} parent=5 // pred_check_branch
        %156 = sbr.rel (%p153) target = $region12
      $region11: #{mean_pooling.1} parent=5 // pred_region
        %s157 = ssub.s32 %s12, 1
      $region12: #{mean_pooling.1} parent=5 // pred_fallthru
        _
      %p158 = scmp.lt.s32.totalorder %s12, 2
      // Predicated region
      $region13: #{mean_pooling.1} parent=5 // pred_check
        %p159 = pneg %p158
      $region14: #{mean_pooling.1} parent=5 // pred_check_branch
        %161 = sbr.rel (%p159) target = $region16
      $region15: #{mean_pooling.1} parent=5 // pred_region
        // Predicated region
        $region17: #{mean_pooling.1} parent=15 // pred_check
          %p162 = pneg %p55
        $region18: #{mean_pooling.1} parent=15 // pred_check_branch
          %164 = sbr.rel (%p162) target = $region20
        $region19: #{mean_pooling.1} parent=15 // pred_region
          %p165 = scmp.lt.s32.totalorder %s19, 1
          %s166 = scalar_select %p165, %s19, 1
          %p167 = scmp.lt.s32.totalorder %s21, 0
          %s168 = scalar_select %p167, %s21, 0
          %p169 = scmp.lt.s32.totalorder %s20, 0
          %s170 = scalar_select %p169, %s20, 0
          %s171 = sadd.s32 %s170, %s168
          %s172 = sadd.s32 %s171, %s166
          %s173 = smul.addr %s172, 8
          %s174 = scalar_lea.vmem %s0, %s173
        $region20: #{mean_pooling.1} parent=15 // pred_fallthru
          _
        // Predicated region
        $region21: #{mean_pooling.1} parent=15 // pred_check
          %p175 = pneg %p83
        $region22: #{mean_pooling.1} parent=15 // pred_check_branch
          %177 = sbr.rel (%p175) target = $region24
        $region23: #{mean_pooling.1} parent=15 // pred_region
          %p178 = scmp.lt.s32.totalorder %s19, 1
          %s179 = scalar_select %p178, %s19, 1
          %p180 = scmp.lt.s32.totalorder %s21, 0
          %s181 = scalar_select %p180, %s21, 0
          %s182 = sadd.s32 %s181, %s179
          %s183 = scalar_lea.vmem %s1, %s182
        $region24: #{mean_pooling.1} parent=15 // pred_fallthru
          _
        // Predicated region
        $region25: #{mean_pooling.1} parent=15 // pred_check
          %p184 = pneg %p109
        $region26: #{mean_pooling.1} parent=15 // pred_check_branch
          %186 = sbr.rel (%p184) target = $region28
        $region27: #{mean_pooling.1} parent=15 // pred_region
          %p187 = scmp.lt.s32.totalorder %s19, 1
          %s188 = scalar_select %p187, %s19, 1
          %s189 = scalar_lea.vmem %s2, %s188
        $region28: #{mean_pooling.1} parent=15 // pred_fallthru
          _
      $region16: #{mean_pooling.1} parent=5 // pred_fallthru
        _
      %p190 = scmp.le.s32.totalorder 1, %s12
      %p191 = scmp.lt.s32.totalorder %s12, 3
      %p192 = pnand %p190, %p191
      %p193 = pneg %p192
      // Predicated region
      $region29: #{mean_pooling.1} parent=5 // pred_check
        _
      $region30: #{mean_pooling.1} parent=5 // pred_check_branch
        %195 = sbr.rel (%p192) target = $region32
      $region31: #{mean_pooling.1} parent=5 // pred_region
        %s196 = ssub.s32 %s12, 1
        %p197 = scmp.lt.s32.totalorder %s22, 1
        %s198 = scalar_select %p197, %s22, 1
        %p199 = scmp.lt.s32.totalorder %s24, 0
        %s200 = scalar_select %p199, %s24, 0
        %p201 = scmp.lt.s32.totalorder %s23, 0
        %s202 = scalar_select %p201, %s23, 0
        %s203 = sadd.s32 %s202, %s200
        %s204 = sadd.s32 %s203, %s198
        %s205 = smul.addr %s204, 8
        %s206 = scalar_lea.vmem %s0, %s205
        %p207 = pneg %p61
        %p208 = pneg %p58
        %p209 = scmp.lt.s32.totalorder %s22, 1
        %s210 = scalar_select %p209, %s22, 1
        %p211 = scmp.lt.s32.totalorder %s24, 0
        %s212 = scalar_select %p211, %s24, 0
        %s213 = sadd.s32 %s212, %s210
        %s214 = scalar_lea.vmem %s1, %s213
        %p215 = pneg %p89
        %p216 = pneg %p86
        %p217 = scmp.lt.s32.totalorder %s22, 1
        %s218 = scalar_select %p217, %s22, 1
        %s219 = scalar_lea.vmem %s2, %s218
        %p220 = pneg %p115
        %p221 = pneg %p112
        %p222 = pneg %p143
        %p223 = pneg %p140
        %s224 = sand.u32 %s130, 1
        %s225 = scalar_lea.sflag [#allocation3], %s224
        %s226 = sand.u32 %s130, 1
        %s227 = scalar_lea.vmem [#allocation2], %s226
        %p228 = scmp.lt.s32.totalorder %s22, 1
        %s229 = scalar_select %p228, %s22, 1
        %p230 = scmp.lt.s32.totalorder %s24, 0
        %s231 = scalar_select %p230, %s24, 0
        %p232 = scmp.lt.s32.totalorder %s23, 0
        %s233 = scalar_select %p232, %s23, 0
        %s234 = sadd.s32 %s233, %s231
        %s235 = sadd.s32 %s234, %s229
        %s236 = smul.addr %s235, 8
        %s237 = scalar_lea.vmem %s0, %s236
        %p238 = scmp.lt.s32.totalorder %s22, 1
        %s239 = scalar_select %p238, %s22, 1
        %p240 = scmp.lt.s32.totalorder %s24, 0
        %s241 = scalar_select %p240, %s24, 0
        %s242 = sadd.s32 %s241, %s239
        %s243 = scalar_lea.vmem %s1, %s242
        %p244 = scmp.lt.s32.totalorder %s22, 1
        %s245 = scalar_select %p244, %s22, 1
        %s246 = scalar_lea.vmem %s2, %s245
        %v247 = vld [vmem:[%s237] sm:$0xff]
        %v248 = vld [vmem:[%s243] sm:$0x1]
        %vm249 = vcmask 64512
        %v251 = vsel %vm249, %v248, 0
        %253 = vmatprep.subr.mxu0 0.0
        %254 = vmatpush1.msra.mxu0 %v247
        %255 = vmatprep.subr.mxu0 0.0
        %256 = vmatpush1.msra.mxu0 0.0
        %257 = vmatprep.subr.mxu0 0.0
        %258 = vmatpush1.msra.mxu0 0.0
        %259 = vmatprep.subr.mxu0 0.0
        %260 = vmatpush1.msra.mxu0 0.0
        %261 = vmatprep.subr.mxu0 0.0
        %262 = vmatpush1.msra.mxu0 0.0
        %263 = vmatprep.subr.mxu0 0.0
        %264 = vmatpush1.msra.mxu0 0.0
        %265 = vmatprep.subr.mxu0 0.0
        %266 = vmatpush1.msra.mxu0 0.0
        %267 = vmatprep.subr.mxu0 0.0
        %268 = vmatpush1.msra.mxu0 0.0
        %269 = vmatprep.subr.mxu0 0.0
        %270 = vmatpush1.msra.mxu0 0.0
        %271 = vmatprep.subr.mxu0 0.0
        %272 = vmatpush1.msra.mxu0 0.0
        %273 = vmatprep.subr.mxu0 0.0
        %274 = vmatpush1.msra.mxu0 0.0
        %275 = vmatprep.subr.mxu0 0.0
        %276 = vmatpush1.msra.mxu0 0.0
        %277 = vmatprep.subr.mxu0 0.0
        %278 = vmatpush1.msra.mxu0 0.0
        %279 = vmatprep.subr.mxu0 0.0
        %280 = vmatpush1.msra.mxu0 0.0
        %281 = vmatprep.subr.mxu0 0.0
        %282 = vmatpush1.msra.mxu0 0.0
        %283 = vmatprep.subr.mxu0 0.0
        %284 = vmatpush1.msra.mxu0 0.0
        %285 = vmatprep.subr.mxu0 0.0
        %286 = vmatpush1.msra.mxu0 0.0
        %287 = vmatprep.subr.mxu0 0.0
        %288 = vmatpush1.msra.mxu0 0.0
        %289 = vmatprep.subr.mxu0 0.0
        %290 = vmatpush1.msra.mxu0 0.0
        %291 = vmatprep.subr.mxu0 0.0
        %292 = vmatpush1.msra.mxu0 0.0
        %293 = vmatprep.subr.mxu0 0.0
        %294 = vmatpush1.msra.mxu0 0.0
        %295 = vmatprep.subr.mxu0 0.0
        %296 = vmatpush1.msra.mxu0 0.0
        %297 = vmatprep.subr.mxu0 0.0
        %298 = vmatpush1.msra.mxu0 0.0
        %299 = vmatprep.subr.mxu0 0.0
        %300 = vmatpush1.msra.mxu0 0.0
        %301 = vmatprep.subr.mxu0 0.0
        %302 = vmatpush1.msra.mxu0 0.0
        %303 = vmatprep.subr.mxu0 0.0
        %304 = vmatpush1.msra.mxu0 0.0
        %305 = vmatprep.subr.mxu0 0.0
        %306 = vmatpush1.msra.mxu0 0.0
        %307 = vmatprep.subr.mxu0 0.0
        %308 = vmatpush1.msra.mxu0 0.0
        %309 = vmatprep.subr.mxu0 0.0
        %310 = vmatpush1.msra.mxu0 0.0
        %311 = vmatprep.subr.mxu0 0.0
        %312 = vmatpush1.msra.mxu0 0.0
        %313 = vmatprep.subr.mxu0 0.0
        %314 = vmatpush1.msra.mxu0 0.0
        %315 = vmatprep.subr.mxu0 0.0
        %316 = vmatpush1.msra.mxu0 0.0
        %317 = vmatprep.mubr.f32.mxu0 0.0
        %318 = vmatmul.mubr.f32.gmra.mrb[0].mxu0 %v251
        %v319 = vpop.f32.mrb[0].mxu0
        %v320 = vadd.f32 0.0, %v319
        %v321 = vpop.f32.mrb[0].mxu0
        %322 = vdwg.mxu0
        %p323 = scmp.eq.s32.totalorder %s24, 0
        // Predicated region
        $region33: #{mean_pooling.1} parent=31 // pred_check
          %p324 = pneg %p323
        $region34: #{mean_pooling.1} parent=31 // pred_check_branch
          %326 = sbr.rel (%p324) target = $region36
        $region35: #{mean_pooling.1} parent=31 // pred_region
          %vm327 = vcmask 253952
          %328 = vst.msk [vmem:[%s227] sm:$0x1] %vm327, %v320
        $region36: #{mean_pooling.1} parent=31 // pred_fallthru
          _
        %p329 = scmp.gt.s32.totalorder %s24, 0
        // Predicated region
        $region37: #{mean_pooling.1} parent=31 // pred_check
          %p330 = pneg %p329
        $region38: #{mean_pooling.1} parent=31 // pred_check_branch
          %332 = sbr.rel (%p330) target = $region40
        $region39: #{mean_pooling.1} parent=31 // pred_region
          %v333 = vld [vmem:[%s227] sm:$0x1]
          %v334 = vadd.f32 %v333, %v320
          %vm335 = vcmask 253952
          %336 = vst.msk [vmem:[%s227] sm:$0x1] %vm335, %v334
        $region40: #{mean_pooling.1} parent=31 // pred_fallthru
          _
        // Predicated region
        $region41: #{mean_pooling.1} parent=31 // pred_check
          %p337 = pneg %p323
        $region42: #{mean_pooling.1} parent=31 // pred_check_branch
          %339 = sbr.rel (%p337) target = $region44
        $region43: #{mean_pooling.1} parent=31 // pred_region
          %v340 = vld [vmem:[%s246] sm:$0x1]
          %v341 = vmax.f32 %v340, 1e-09
          %v342 = vrcp.pop %v341
          %v343 = vmul.f32 %v341, %v342
          %v344 = vsub.f32 2.0, %v343
          %v345 = vmul.f32 %v342, %v344
          %v346 = vld [vmem:[%s227] sm:$0x1]
          %348 = vset.pattern.permute.xlu0 0
          %349 = vperm.xlu0 %348, %v345
          %v350 = vpop.permute.xlu0 %349
          %v352 = vlaneseq
          %v353 = vshrl.u32 %v352, 7
          %v354 = vsub.s32 0, %v353
          %v355 = vrot.slane %v350, %v354
          %v356 = vmul.f32 %v346, %v355
          %vm357 = vcmask 253952
          %358 = vst.msk [vmem:[%s227] sm:$0x1] %vm357, %v356
        $region44: #{mean_pooling.1} parent=31 // pred_fallthru
          _
        %s359 = sand.u32 %s130, 1
        %s360 = scalar_lea.sflag [#allocation3], %s359
        %s361 = sand.u32 %s130, 1
        %s362 = scalar_lea.vmem [#allocation2], %s361
        // Predicated region
        $region45: #{mean_pooling.1} parent=31 // pred_check
          %p363 = pneg %p140
        $region46: #{mean_pooling.1} parent=31 // pred_check_branch
          %365 = sbr.rel (%p363) target = $region48
        $region47: #{mean_pooling.1} parent=31 // pred_region
          %s367 = ssub.s32 16, 16
          %368 = vsyncadd %s360, %s367
          %s369 = sadd.s32 %s23, %s22
          %s370 = smul.addr %s369, 16
          %s371 = scalar_lea.hbm %s3, %s370
          %s373 = sshll.u32 %s362, 4
          %s374 = int_to_ptr.vmem [resolvable:$true] %s373
          %376 = dma.vmem_to_hbm [thread:$0]  %s374, 16, %s371, %s360
        $region48: #{mean_pooling.1} parent=31 // pred_fallthru
          _
      $region32: #{mean_pooling.1} parent=5 // pred_fallthru
        _
      %p377 = scmp.le.s32.totalorder 2, %s12
      // Predicated region
      $region49: #{mean_pooling.1} parent=5 // pred_check
        %p378 = pneg %p377
      $region50: #{mean_pooling.1} parent=5 // pred_check_branch
        %380 = sbr.rel (%p378) target = $region52
      $region51: #{mean_pooling.1} parent=5 // pred_region
        %s381 = ssub.s32 %s12, 2
        // Predicated region
        $region53: #{mean_pooling.1} parent=51 // pred_check
          %p382 = pneg %p146
        $region54: #{mean_pooling.1} parent=51 // pred_check_branch
          %384 = sbr.rel (%p382) target = $region56
        $region55: #{mean_pooling.1} parent=51 // pred_region
          %s385 = sand.u32 %s131, 1
          %s386 = scalar_lea.sflag [#allocation3], %s385
          %s387 = sand.u32 %s131, 1
          %s388 = scalar_lea.vmem [#allocation2], %s387
          %389 = dma.done %s386, 16
        $region56: #{mean_pooling.1} parent=51 // pred_fallthru
          _
      $region52: #{mean_pooling.1} parent=5 // pred_fallthru
        _
    $region6: #{mean_pooling.1} parent=1 // loop_footer
      %s16 = sadd.s32 1, %s12
    $region7: #{mean_pooling.1} parent=1 // loop_footer_branch
      %11 = sbr.rel target = $region3
    $region8: #{mean_pooling.1} parent=1 // loop_exit
      _
    %390 = vsyncpa [#allocation3], 1
    %s391 = scalar_lea.sflag [#allocation3], 1
    %392 = vsyncpa %s391, 1

</llo_original>
